<compile_context>
chip_gen: v6e
topology: v6e:2x2x1
jax: 0.10.0
libtpu: 0.0.40
codegen_flags: <defaults>
</compile_context>

<pallas_src>
import jax
import jax.numpy as jnp
from jax.experimental import pallas as pl
from jax.experimental.pallas import tpu as pltpu

LANE = 128  # TPU vreg lane width


def _round_up(n, m):
    return ((n + m - 1) // m) * m


# ----------------------------------------------------------------------------
# Kernel
# ----------------------------------------------------------------------------
def speaker_kernel(
    x_ref,      # (TILE_B, F)        float32 (cast to bf16 in-kernel)
    wcat_ref,   # (F, SLAB)          bf16   [layer1(BN-folded) | skip | 0-pad]
    bcat_ref,   # (1, SLAB)          f32    [b1'              | bsk  | 0-pad]
    w2_ref,     # (SLAB, H2)         bf16   layer2(BN-folded); zero rows at skip/pad lanes
    b2_ref,     # (1, H2)            f32
    w3m_ref,    # (H2, S)            bf16   layer3 (main path)
    w3s_ref,    # (SLAB, S)          bf16   layer3 applied to skip lanes of act; zero rows elsewhere
    b3_ref,     # (1, S)             f32
    o_ref,      # (TILE_B, S)        bf16   narrow, unpadded logits
):
    # In-kernel cast (free VPU work under the HBM bottleneck).
    x = x_ref[...].astype(wcat_ref.dtype)

    # act lanes [0,H)      = relu(bn1(layer1(x)))   (main path, dropout=eval identity)
    # act lanes [H,H+H2)   = relu(skip(x))
    # act lanes [H+H2,...) = relu(0 + 0) = 0
    act = jnp.maximum(
        jnp.dot(x, wcat_ref[...], preferred_element_type=jnp.float32)
        + bcat_ref[...],
        0.0,
    )
    act_c = act.astype(w2_ref.dtype)

    # main = relu(bn2(layer2(main))); skip/pad lanes hit zero rows of w2.
    h2 = jnp.maximum(
        jnp.dot(act_c, w2_ref[...], preferred_element_type=jnp.float32)
        + b2_ref[...],
        0.0,
    )

    # output = layer3(main + skip) = main @ W3 + skip @ W3 + b3
    # (skip @ W3 realized as act @ W3s where W3s has W3 at the skip lanes).
    out = (
        jnp.dot(h2.astype(w3m_ref.dtype), w3m_ref[...],
                preferred_element_type=jnp.float32)
        + jnp.dot(act_c, w3s_ref[...], preferred_element_type=jnp.float32)
        + b3_ref[...]
    )
    o_ref[...] = out.astype(o_ref.dtype)


# ----------------------------------------------------------------------------
# Host-side parameter preparation: fold BN, pack stage-1 slab, zero-pad, cast.
# ----------------------------------------------------------------------------
def prepare_params(raw, compute_dtype=jnp.bfloat16, eps=1e-5):
    """Fold eval-mode BatchNorm into the Linears and pack weights for the kernel.

    Raw weights are stored transposed vs. PyTorch, i.e. (in_features,
    out_features), so the kernel computes plain `x @ W`.
    """
    # Fold BN1 into layer1.
    s1 = raw["gamma1"] / jnp.sqrt(raw["var1"] + eps)
    sh1 = raw["beta1"] - raw["mean1"] * s1
    w1f = raw["w1"] * s1[None, :]
    b1f = raw["b1"] * s1 + sh1

    # Fold BN2 into layer2.
    s2 = raw["gamma2"] / jnp.sqrt(raw["var2"] + eps)
    sh2 = raw["beta2"] - raw["mean2"] * s2
    w2f = raw["w2"] * s2[None, :]
    b2f = raw["b2"] * s2 + sh2

    in_size, hidden = w1f.shape
    h2d = w2f.shape[1]
    num_spk = raw["w3"].shape[1]

    # One shared stage-1 output slab: [h1 | skip | zero-pad] along lanes.
    slab = _round_up(hidden + h2d, LANE)
    h1_off, sk_off = 0, hidden

    wcat = jnp.zeros((in_size, slab), jnp.float32)
    wcat = wcat.at[:, h1_off:h1_off + hidden].set(w1f)
    wcat = wcat.at[:, sk_off:sk_off + h2d].set(raw["wsk"])

    bcat = jnp.zeros((slab,), jnp.float32)
    bcat = bcat.at[h1_off:h1_off + hidden].set(b1f)
    bcat = bcat.at[sk_off:sk_off + h2d].set(raw["bsk"])

    # layer2 (BN-folded) reads only the h1 lanes of the slab.
    w2big = jnp.zeros((slab, h2d), jnp.float32)
    w2big = w2big.at[h1_off:h1_off + hidden, :].set(w2f)

    # layer3 applied to the skip lanes of the slab (zero rows elsewhere).
    w3skip = jnp.zeros((slab, num_spk), jnp.float32)
    w3skip = w3skip.at[sk_off:sk_off + h2d, :].set(raw["w3"])

    return dict(
        wcat=wcat.astype(compute_dtype),
        bcat=bcat[None, :].astype(jnp.float32),
        w2=w2big.astype(compute_dtype),
        b2=b2f[None, :].astype(jnp.float32),
        w3m=raw["w3"].astype(compute_dtype),
        w3s=w3skip.astype(compute_dtype),
        b3=raw["b3"][None, :].astype(jnp.float32),
        compute_dtype=compute_dtype,
        dims=dict(input_size=in_size, slab=slab, h2d=h2d,
                  num_speakers=num_spk),
    )


# ----------------------------------------------------------------------------
# Wrapper
# ----------------------------------------------------------------------------
def _pick_tile_b(batch):
    """Adaptive batch tile: 16-row aligned, whole batch if small, else >=2
    grid steps (v7x megacore) capped at 2048 rows/tile (HBM-roofline plateau)."""
    b16 = _round_up(batch, 16)
    if b16 <= 1024:
        return b16
    return min(2048, _round_up((b16 + 1) // 2, 16))


def speaker_recognition_forward(x, prep, tile_b=None, out_dtype=jnp.bfloat16):
    """x: [B, input_size] float32 (cast to bf16 inside the kernel).
    Returns [B, num_speakers] logits in `out_dtype` (bf16 by default)."""
    dims = prep["dims"]
    B, F = x.shape
    assert F == dims["input_size"]

    if tile_b is None:
        tile_b = _pick_tile_b(B)
    b_pad = _round_up(B, tile_b)

    # Only pad batch rows (no dtype round trip); zero rows are sliced off below.
    xp = x if b_pad == B else jnp.pad(x, ((0, b_pad - B), (0, 0)))

    slab, h2d, nspk = dims["slab"], dims["h2d"], dims["num_speakers"]

    # Weights/biases use constant index maps -> VMEM-resident across tiles.
    in_specs = [
        pl.BlockSpec((tile_b, F), lambda i: (i, 0)),     # x
        pl.BlockSpec((F, slab), lambda i: (0, 0)),       # wcat
        pl.BlockSpec((1, slab), lambda i: (0, 0)),       # bcat
        pl.BlockSpec((slab, h2d), lambda i: (0, 0)),     # w2
        pl.BlockSpec((1, h2d), lambda i: (0, 0)),        # b2
        pl.BlockSpec((h2d, nspk), lambda i: (0, 0)),     # w3 main
        pl.BlockSpec((slab, nspk), lambda i: (0, 0)),    # w3 skip
        pl.BlockSpec((1, nspk), lambda i: (0, 0)),       # b3
    ]
    out_spec = pl.BlockSpec((tile_b, nspk), lambda i: (i, 0))

    out_pad = pl.pallas_call(
        speaker_kernel,
        out_shape=jax.ShapeDtypeStruct((b_pad, nspk), out_dtype),
        grid_spec=pltpu.PrefetchScalarGridSpec(
            num_scalar_prefetch=0,
            grid=(b_pad // tile_b,),
            in_specs=in_specs,
            out_specs=out_spec,
        ),
        compiler_params=pltpu.CompilerParams(
            dimension_semantics=("parallel",),
        ),
    )(xp, prep["wcat"], prep["bcat"], prep["w2"], prep["b2"],
      prep["w3m"], prep["w3s"], prep["b3"])

    # Output is already lane-narrow (num_speakers wide); only trim padded rows.
    return out_pad if b_pad == B else out_pad[:B]


# ----------------------------------------------------------------------------
# Synthetic parameters + pure-JAX reference (mirrors PyTorch eval forward)
# ----------------------------------------------------------------------------
def init_raw_params(key, input_size, hidden_size, num_speakers):
    h2 = hidden_size // 2
    ks = jax.random.split(key, 12)

    def lin(kw, kb, fan_in, fan_out):
        # PyTorch Linear stores (out, in); we store transposed (in, out).
        w = jax.random.normal(kw, (fan_in, fan_out), jnp.float32) * 0.1
        b = jax.random.normal(kb, (fan_out,), jnp.float32) * 0.1
        return w, b

    w1, b1 = lin(ks[0], ks[1], input_size, hidden_size)
    w2, b2 = lin(ks[2], ks[3], hidden_size, h2)
    wsk, bsk = lin(ks[4], ks[5], input_size, h2)
    w3, b3 = lin(ks[6], ks[7], h2, num_speakers)

    def bn(kg, kb, n):
        gamma = 1.0 + 0.1 * jax.random.normal(kg, (n,), jnp.float32)
        beta = 0.1 * jax.random.normal(kb, (n,), jnp.float32)
        mean = 0.05 * jnp.arange(n, dtype=jnp.float32)
        var = 1.0 + 0.01 * jnp.arange(n, dtype=jnp.float32)
        return gamma, beta, mean, var

    g1, be1, m1, v1 = bn(ks[8], ks[9], hidden_size)
    g2, be2, m2, v2 = bn(ks[10], ks[11], h2)

    return dict(w1=w1, b1=b1, gamma1=g1, beta1=be1, mean1=m1, var1=v1,
                w2=w2, b2=b2, gamma2=g2, beta2=be2, mean2=m2, var2=v2,
                wsk=wsk, bsk=bsk, w3=w3, b3=b3)


def reference_forward(x, raw, eps=1e-5):
    """Pure-JAX f32 reference of the PyTorch forward (eval mode)."""
    h = x @ raw["w1"] + raw["b1"]
    h = (h - raw["mean1"]) / jnp.sqrt(raw["var1"] + eps) * raw["gamma1"] + raw["beta1"]
    h = jnp.maximum(h, 0.0)
    h = h @ raw["w2"] + raw["b2"]
    h = (h - raw["mean2"]) / jnp.sqrt(raw["var2"] + eps) * raw["gamma2"] + raw["beta2"]
    h = jnp.maximum(h, 0.0)
    sk = jnp.maximum(x @ raw["wsk"] + raw["bsk"], 0.0)
    return (h + sk) @ raw["w3"] + raw["b3"]


if __name__ == "__main__":
    # Small shapes consistent with the module: x is [batch, input_size].
    batch, input_size, hidden_size, num_speakers = 8, 32, 32, 8

    key = jax.random.PRNGKey(0)
    kx, kp = jax.random.split(key)
    x = jax.random.normal(kx, (batch, input_size), jnp.float32)

    raw = init_raw_params(kp, input_size, hidden_size, num_speakers)
    prep = prepare_params(raw, compute_dtype=jnp.bfloat16)

    out = speaker_recognition_forward(x, prep)
    out = jax.block_until_ready(out)

    ref = reference_forward(x, raw)
    assert out.shape == (batch, num_speakers)
    out_f32 = out.astype(jnp.float32)
    max_err = float(jnp.max(jnp.abs(out_f32 - ref)))
    # bf16 matmul operands + bf16 logits, f32 accumulation -> small quant error.
    assert jnp.allclose(out_f32, ref, atol=6e-2, rtol=6e-2), \
        f"mismatch, max |err|={max_err}"

    print("KERNEL_OK")
</pallas_src>

<mosaic_0001>
module attributes {stable_mosaic.version = 11 : i64} {
  func.func @speaker_kernel(%arg0: i32, %arg1: memref<16x32xf32, #tpu.memory_space<vmem>>, %arg2: memref<32x128xbf16, #tpu.memory_space<vmem>>, %arg3: memref<1x128xf32, #tpu.memory_space<vmem>>, %arg4: memref<128x16xbf16, #tpu.memory_space<vmem>>, %arg5: memref<1x16xf32, #tpu.memory_space<vmem>>, %arg6: memref<16x8xbf16, #tpu.memory_space<vmem>>, %arg7: memref<128x8xbf16, #tpu.memory_space<vmem>>, %arg8: memref<1x8xf32, #tpu.memory_space<vmem>>, %arg9: memref<16x8xbf16, #tpu.memory_space<vmem>>) attributes {dimension_semantics = [#tpu.dimension_semantics<parallel>], iteration_bounds = array<i64: 1>, scalar_prefetch = 0 : i64, scratch_operands = 0 : i64, tpu.core_type = #tpu.core_type<tc>, window_params = [{transform_indices = @transform_0, window_bounds = array<i64: 16, 32>}, {pipeline_mode = #tpu.pipeline_mode<synchronous>, transform_indices = @transform_1, window_bounds = array<i64: 32, 128>}, {pipeline_mode = #tpu.pipeline_mode<synchronous>, transform_indices = @transform_2, window_bounds = array<i64: 1, 128>}, {pipeline_mode = #tpu.pipeline_mode<synchronous>, transform_indices = @transform_3, window_bounds = array<i64: 128, 16>}, {pipeline_mode = #tpu.pipeline_mode<synchronous>, transform_indices = @transform_4, window_bounds = array<i64: 1, 16>}, {pipeline_mode = #tpu.pipeline_mode<synchronous>, transform_indices = @transform_5, window_bounds = array<i64: 16, 8>}, {pipeline_mode = #tpu.pipeline_mode<synchronous>, transform_indices = @transform_6, window_bounds = array<i64: 128, 8>}, {pipeline_mode = #tpu.pipeline_mode<synchronous>, transform_indices = @transform_7, window_bounds = array<i64: 1, 8>}, {transform_indices = @transform_8, window_bounds = array<i64: 16, 8>}]} {
    %c0 = arith.constant 0 : index
    %c0_0 = arith.constant 0 : index
    %0 = vector.load %arg1[%c0, %c0_0] : memref<16x32xf32, #tpu.memory_space<vmem>>, vector<16x32xf32>
    %1 = arith.truncf %0 : vector<16x32xf32> to vector<16x32xbf16>
    %c0_1 = arith.constant 0 : index
    %c0_2 = arith.constant 0 : index
    %2 = vector.load %arg2[%c0_1, %c0_2] : memref<32x128xbf16, #tpu.memory_space<vmem>>, vector<32x128xbf16>
    %cst = arith.constant dense<0.000000e+00> : vector<16x128xf32>
    %3 = tpu.matmul %1, %2, %cst {dimension_numbers = #tpu.dot_dimension_numbers<[1], [0], [0], [1], [0, 0, 1, 1], [], []>} : vector<16x32xbf16>, vector<32x128xbf16>, vector<16x128xf32> -> vector<16x128xf32>
    %c0_3 = arith.constant 0 : index
    %c0_4 = arith.constant 0 : index
    %4 = vector.load %arg3[%c0_3, %c0_4] : memref<1x128xf32, #tpu.memory_space<vmem>>, vector<1x128xf32>
    %5 = vector.broadcast %4 : vector<1x128xf32> to vector<16x128xf32>
    %6 = arith.addf %3, %5 : vector<16x128xf32>
    %cst_5 = arith.constant 0.000000e+00 : f32
    %7 = vector.broadcast %cst_5 : f32 to vector<16x128xf32>
    %8 = arith.maximumf %6, %7 : vector<16x128xf32>
    %9 = arith.truncf %8 : vector<16x128xf32> to vector<16x128xbf16>
    %c0_6 = arith.constant 0 : index
    %c0_7 = arith.constant 0 : index
    %10 = vector.load %arg4[%c0_6, %c0_7] : memref<128x16xbf16, #tpu.memory_space<vmem>>, vector<128x16xbf16>
    %cst_8 = arith.constant dense<0.000000e+00> : vector<16x16xf32>
    %11 = tpu.matmul %9, %10, %cst_8 {dimension_numbers = #tpu.dot_dimension_numbers<[1], [0], [0], [1], [0, 0, 1, 1], [], []>} : vector<16x128xbf16>, vector<128x16xbf16>, vector<16x16xf32> -> vector<16x16xf32>
    %c0_9 = arith.constant 0 : index
    %c0_10 = arith.constant 0 : index
    %12 = vector.load %arg5[%c0_9, %c0_10] : memref<1x16xf32, #tpu.memory_space<vmem>>, vector<1x16xf32>
    %13 = vector.broadcast %12 : vector<1x16xf32> to vector<16x16xf32>
    %14 = arith.addf %11, %13 : vector<16x16xf32>
    %cst_11 = arith.constant 0.000000e+00 : f32
    %15 = vector.broadcast %cst_11 : f32 to vector<16x16xf32>
    %16 = arith.maximumf %14, %15 : vector<16x16xf32>
    %17 = arith.truncf %16 : vector<16x16xf32> to vector<16x16xbf16>
    %c0_12 = arith.constant 0 : index
    %c0_13 = arith.constant 0 : index
    %18 = vector.load %arg6[%c0_12, %c0_13] : memref<16x8xbf16, #tpu.memory_space<vmem>>, vector<16x8xbf16>
    %cst_14 = arith.constant dense<0.000000e+00> : vector<16x8xf32>
    %19 = tpu.matmul %17, %18, %cst_14 {dimension_numbers = #tpu.dot_dimension_numbers<[1], [0], [0], [1], [0, 0, 1, 1], [], []>} : vector<16x16xbf16>, vector<16x8xbf16>, vector<16x8xf32> -> vector<16x8xf32>
    %c0_15 = arith.constant 0 : index
    %c0_16 = arith.constant 0 : index
    %20 = vector.load %arg7[%c0_15, %c0_16] : memref<128x8xbf16, #tpu.memory_space<vmem>>, vector<128x8xbf16>
    %cst_17 = arith.constant dense<0.000000e+00> : vector<16x8xf32>
    %21 = tpu.matmul %9, %20, %cst_17 {dimension_numbers = #tpu.dot_dimension_numbers<[1], [0], [0], [1], [0, 0, 1, 1], [], []>} : vector<16x128xbf16>, vector<128x8xbf16>, vector<16x8xf32> -> vector<16x8xf32>
    %22 = arith.addf %19, %21 : vector<16x8xf32>
    %c0_18 = arith.constant 0 : index
    %c0_19 = arith.constant 0 : index
    %23 = vector.load %arg8[%c0_18, %c0_19] : memref<1x8xf32, #tpu.memory_space<vmem>>, vector<1x8xf32>
    %24 = vector.broadcast %23 : vector<1x8xf32> to vector<16x8xf32>
    %25 = arith.addf %22, %24 : vector<16x8xf32>
    %26 = arith.truncf %25 : vector<16x8xf32> to vector<16x8xbf16>
    %c0_20 = arith.constant 0 : index
    %c0_21 = arith.constant 0 : index
    %27 = vector.load %arg9[%c0_20, %c0_21] : memref<16x8xbf16, #tpu.memory_space<vmem>>, vector<16x8xbf16>
    tpu.vector_store %arg9[%c0_20, %c0_21], %26 {strides = array<i32>} : memref<16x8xbf16, #tpu.memory_space<vmem>>, vector<16x8xbf16>,
    return
  }
  func.func @transform_0(%arg0: i32) -> (i32, i32) {
    %c0_i32 = arith.constant 0 : i32
    %c0_i32_0 = arith.constant 0 : i32
    return %arg0, %c0_i32 : i32, i32
  }
  func.func @transform_1(%arg0: i32) -> (i32, i32) {
    %c0_i32 = arith.constant 0 : i32
    %c0_i32_0 = arith.constant 0 : i32
    %c0_i32_1 = arith.constant 0 : i32
    return %c0_i32, %c0_i32_0 : i32, i32
  }
  func.func @transform_2(%arg0: i32) -> (i32, i32) {
    %c0_i32 = arith.constant 0 : i32
    %c0_i32_0 = arith.constant 0 : i32
    %c0_i32_1 = arith.constant 0 : i32
    return %c0_i32, %c0_i32_0 : i32, i32
  }
  func.func @transform_3(%arg0: i32) -> (i32, i32) {
    %c0_i32 = arith.constant 0 : i32
    %c0_i32_0 = arith.constant 0 : i32
    %c0_i32_1 = arith.constant 0 : i32
    return %c0_i32, %c0_i32_0 : i32, i32
  }
  func.func @transform_4(%arg0: i32) -> (i32, i32) {
    %c0_i32 = arith.constant 0 : i32
    %c0_i32_0 = arith.constant 0 : i32
    %c0_i32_1 = arith.constant 0 : i32
    return %c0_i32, %c0_i32_0 : i32, i32
  }
  func.func @transform_5(%arg0: i32) -> (i32, i32) {
    %c0_i32 = arith.constant 0 : i32
    %c0_i32_0 = arith.constant 0 : i32
    %c0_i32_1 = arith.constant 0 : i32
    return %c0_i32, %c0_i32_0 : i32, i32
  }
  func.func @transform_6(%arg0: i32) -> (i32, i32) {
    %c0_i32 = arith.constant 0 : i32
    %c0_i32_0 = arith.constant 0 : i32
    %c0_i32_1 = arith.constant 0 : i32
    return %c0_i32, %c0_i32_0 : i32, i32
  }
  func.func @transform_7(%arg0: i32) -> (i32, i32) {
    %c0_i32 = arith.constant 0 : i32
    %c0_i32_0 = arith.constant 0 : i32
    %c0_i32_1 = arith.constant 0 : i32
    return %c0_i32, %c0_i32_0 : i32, i32
  }
  func.func @transform_8(%arg0: i32) -> (i32, i32) {
    %c0_i32 = arith.constant 0 : i32
    %c0_i32_0 = arith.constant 0 : i32
    return %arg0, %c0_i32 : i32, i32
  }
}

</mosaic_0001>

<llo_original>
// kernel: tpu_custom_call.1
$region0: #{tpu_custom_call.1}
  #allocation0 [shape = 'u32[]', space=smem, size = 0x4, offset = 0x4, fixed_abs, tag = 'smem constant byte address 0x4 - core index']
  #allocation1 [shape = 'u32[144,128]{1,0:T(1,128)}', space=vmem, size = 0x12000, scoped, tag = 'internal scratch']
  %s0 = inlined_call_operand.vmem [shape: f32[16,32], index: 0, kind: input, shape index: {}]
  %s1 = inlined_call_operand.vmem [shape: bf16[32,128], index: 1, kind: input, shape index: {}]
  %s2 = inlined_call_operand.vmem [shape: f32[1,128], index: 2, kind: input, shape index: {}]
  %s3 = inlined_call_operand.vmem [shape: bf16[128,16], index: 3, kind: input, shape index: {}]
  %s4 = inlined_call_operand.vmem [shape: f32[1,16], index: 4, kind: input, shape index: {}]
  %s5 = inlined_call_operand.vmem [shape: bf16[16,8], index: 5, kind: input, shape index: {}]
  %s6 = inlined_call_operand.vmem [shape: bf16[128,8], index: 6, kind: input, shape index: {}]
  %s7 = inlined_call_operand.vmem [shape: f32[1,8], index: 7, kind: input, shape index: {}]
  %s8 = inlined_call_operand.vmem [shape: bf16[16,8], index: 8, kind: output, shape index: {}]
  %s9 = sld [smem:[#allocation0]]
  $region42: #{tpu_custom_call.1} parent=0
    _
  %s11 = ssub.s32 1, %s9
  %s12 = scalar_select 0, %s11, %s9
  // Predicated region
  $region2: #{tpu_custom_call.1} parent=0 // pred_check
    _
  $region3: #{tpu_custom_call.1} parent=0 // pred_check_branch
    %14 = sbr.rel (0) target = $region5
  $region4: #{tpu_custom_call.1} parent=0 // pred_region
    _
  $region5: #{tpu_custom_call.1} parent=0 // pred_fallthru
    _
  // Predicated region
  $region6: #{tpu_custom_call.1} parent=0 // pred_check
    _
  $region7: #{tpu_custom_call.1} parent=0 // pred_check_branch
    %16 = sbr.rel (0) target = $region9
  $region8: #{tpu_custom_call.1} parent=0 // pred_region
    _
  $region9: #{tpu_custom_call.1} parent=0 // pred_fallthru
    _
  // Predicated region
  $region10: #{tpu_custom_call.1} parent=0 // pred_check
    _
  $region11: #{tpu_custom_call.1} parent=0 // pred_check_branch
    %18 = sbr.rel (0) target = $region13
  $region12: #{tpu_custom_call.1} parent=0 // pred_region
    _
  $region13: #{tpu_custom_call.1} parent=0 // pred_fallthru
    _
  // Predicated region
  $region14: #{tpu_custom_call.1} parent=0 // pred_check
    _
  $region15: #{tpu_custom_call.1} parent=0 // pred_check_branch
    %20 = sbr.rel (0) target = $region17
  $region16: #{tpu_custom_call.1} parent=0 // pred_region
    _
  $region17: #{tpu_custom_call.1} parent=0 // pred_fallthru
    _
  // Predicated region
  $region18: #{tpu_custom_call.1} parent=0 // pred_check
    _
  $region19: #{tpu_custom_call.1} parent=0 // pred_check_branch
    %22 = sbr.rel (0) target = $region21
  $region20: #{tpu_custom_call.1} parent=0 // pred_region
    _
  $region21: #{tpu_custom_call.1} parent=0 // pred_fallthru
    _
  // Predicated region
  $region22: #{tpu_custom_call.1} parent=0 // pred_check
    _
  $region23: #{tpu_custom_call.1} parent=0 // pred_check_branch
    %24 = sbr.rel (0) target = $region25
  $region24: #{tpu_custom_call.1} parent=0 // pred_region
    _
  $region25: #{tpu_custom_call.1} parent=0 // pred_fallthru
    _
  // Predicated region
  $region26: #{tpu_custom_call.1} parent=0 // pred_check
    _
  $region27: #{tpu_custom_call.1} parent=0 // pred_check_branch
    %26 = sbr.rel (0) target = $region29
  $region28: #{tpu_custom_call.1} parent=0 // pred_region
    _
  $region29: #{tpu_custom_call.1} parent=0 // pred_fallthru
    _
  // Predicated region
  $region30: #{tpu_custom_call.1} parent=0 // pred_check
    _
  $region31: #{tpu_custom_call.1} parent=0 // pred_check_branch
    %28 = sbr.rel (0) target = $region33
  $region32: #{tpu_custom_call.1} parent=0 // pred_region
    _
  $region33: #{tpu_custom_call.1} parent=0 // pred_fallthru
    _
  %v30 = vld [vmem:[%s0] sm:$0xff]
  %v31 = vld [vmem:[%s0 + $0x8] sm:$0xff]
  %v32 = vpack.c.bf16 %v31, %v30
  %v33 = vld [vmem:[%s1] sm:$0xf]
  %v34 = vld [vmem:[%s1 + $0x4] sm:$0xf]
  %v35 = vld [vmem:[%s1 + $0x8] sm:$0xf]
  %v36 = vld [vmem:[%s1 + $0xc] sm:$0xf]
  %v37 = vld [vmem:[%s2] sm:$0x1]
  %v39 = vlaneseq
  %v40 = vshrl.u32 %v39, 7
  %v41 = vsub.s32 0, %v40
  %v42 = vrot.slane %v37, %v41
  %v48 = vunpack.c.l.b16 %v33
  %v49 = vunpack.c.l.b16 %v34
  %v50 = vunpack.c.l.b16 %v35
  %v51 = vunpack.c.l.b16 %v36
  %v52 = vpack.c.b16 %v49, %v48
  %v53 = vpack.c.b16 %v51, %v50
  %vm56 = vcmask 261120
  %v58 = vsel %vm56, %v32, 0
  %60 = vmatprep.subr.bf16.mxu0 0
  %61 = vmatpush1.bf16.msra.mxu0 0
  %62 = vmatprep.subr.bf16.mxu0 0
  %63 = vmatpush1.bf16.msra.mxu0 0
  %64 = vmatprep.subr.bf16.mxu0 0
  %65 = vmatpush1.bf16.msra.mxu0 0
  %66 = vmatprep.subr.bf16.mxu0 0
  %67 = vmatpush1.bf16.msra.mxu0 0
  %68 = vmatprep.subr.bf16.mxu0 0
  %69 = vmatpush1.bf16.msra.mxu0 0
  %70 = vmatprep.subr.bf16.mxu0 0
  %71 = vmatpush1.bf16.msra.mxu0 0
  %72 = vmatprep.subr.bf16.mxu0 0
  %73 = vmatpush1.bf16.msra.mxu0 %v53
  %74 = vmatprep.subr.bf16.mxu0 0
  %75 = vmatpush1.bf16.msra.mxu0 %v52
  %76 = vmatprep.subr.bf16.mxu0 0
  %77 = vmatpush2.bf16.msra.mxu0 0
  %78 = vmatprep.subr.bf16.mxu0 0
  %79 = vmatpush2.bf16.msra.mxu0 0
  %80 = vmatprep.subr.bf16.mxu0 0
  %81 = vmatpush2.bf16.msra.mxu0 0
  %82 = vmatprep.subr.bf16.mxu0 0
  %83 = vmatpush2.bf16.msra.mxu0 0
  %84 = vmatprep.subr.bf16.mxu0 0
  %85 = vmatpush2.bf16.msra.mxu0 0
  %86 = vmatprep.subr.bf16.mxu0 0
  %87 = vmatpush2.bf16.msra.mxu0 0
  %88 = vmatprep.subr.bf16.mxu0 0
  %89 = vmatpush2.bf16.msra.mxu0 0
  %90 = vmatprep.subr.bf16.mxu0 0
  %91 = vmatpush2.bf16.msra.mxu0 0
  %92 = vmatprep.mubr.bf16.mxu0 0
  %93 = vmatmul.mubr.bf16.gmra.mxu0 %v58
  %v94 = vpop.f32.mrf.mxu0
  %v95 = vadd.f32 %v42, %v94
  %v96 = vpop.f32.mrf.mxu0
  %v97 = vpop.f32.mrf.mxu0
  %v98 = vadd.f32 %v42, %v97
  %v99 = vpop.f32.mrf.mxu0
  %100 = vdwg.mxu0
  %v101 = vmax.f32 %v95, 0.0
  %v102 = vmax.f32 %v98, 0.0
  %v103 = vpack.c.bf16 %v102, %v101
  %v104 = vld [vmem:[%s3] sm:$0xf]
  %v105 = vld [vmem:[%s3 + $0x4] sm:$0xf]
  %v106 = vld [vmem:[%s3 + $0x8] sm:$0xf]
  %v107 = vld [vmem:[%s3 + $0xc] sm:$0xf]
  %v108 = vld [vmem:[%s3 + $0x10] sm:$0xf]
  %v109 = vld [vmem:[%s3 + $0x14] sm:$0xf]
  %v110 = vld [vmem:[%s3 + $0x18] sm:$0xf]
  %v111 = vld [vmem:[%s3 + $0x1c] sm:$0xf]
  %v112 = vld [vmem:[%s3 + $0x20] sm:$0xf]
  %v113 = vld [vmem:[%s3 + $0x24] sm:$0xf]
  %v114 = vld [vmem:[%s3 + $0x28] sm:$0xf]
  %v115 = vld [vmem:[%s3 + $0x2c] sm:$0xf]
  %v116 = vld [vmem:[%s3 + $0x30] sm:$0xf]
  %v117 = vld [vmem:[%s3 + $0x34] sm:$0xf]
  %v118 = vld [vmem:[%s3 + $0x38] sm:$0xf]
  %v119 = vld [vmem:[%s3 + $0x3c] sm:$0xf]
  %v120 = vld [vmem:[%s4] sm:$0x1]
  %v122 = vlaneseq
  %v123 = vshrl.u32 %v122, 7
  %v124 = vsub.s32 0, %v123
  %v125 = vrot.slane %v120, %v124
  %v143 = vunpack.c.l.b16 %v104
  %v144 = vunpack.c.l.b16 %v105
  %v145 = vunpack.c.l.b16 %v106
  %v146 = vunpack.c.l.b16 %v107
  %v147 = vunpack.c.l.b16 %v108
  %v148 = vunpack.c.l.b16 %v109
  %v149 = vunpack.c.l.b16 %v110
  %v150 = vunpack.c.l.b16 %v111
  %v151 = vunpack.c.l.b16 %v112
  %v152 = vunpack.c.l.b16 %v113
  %v153 = vunpack.c.l.b16 %v114
  %v154 = vunpack.c.l.b16 %v115
  %v155 = vunpack.c.l.b16 %v116
  %v156 = vunpack.c.l.b16 %v117
  %v157 = vunpack.c.l.b16 %v118
  %v158 = vunpack.c.l.b16 %v119
  %v159 = vpack.c.b16 %v144, %v143
  %v160 = vpack.c.b16 %v146, %v145
  %v161 = vpack.c.b16 %v148, %v147
  %v162 = vpack.c.b16 %v150, %v149
  %v163 = vpack.c.b16 %v152, %v151
  %v164 = vpack.c.b16 %v154, %v153
  %v165 = vpack.c.b16 %v156, %v155
  %v166 = vpack.c.b16 %v158, %v157
  %175 = vmatprep.subr.bf16.mxu0 0
  %176 = vmatpush1.bf16.msra.mxu0 %v166
  %177 = vmatprep.subr.bf16.mxu0 0
  %178 = vmatpush1.bf16.msra.mxu0 %v165
  %179 = vmatprep.subr.bf16.mxu0 0
  %180 = vmatpush1.bf16.msra.mxu0 %v164
  %181 = vmatprep.subr.bf16.mxu0 0
  %182 = vmatpush1.bf16.msra.mxu0 %v163
  %183 = vmatprep.subr.bf16.mxu0 0
  %184 = vmatpush1.bf16.msra.mxu0 %v162
  %185 = vmatprep.subr.bf16.mxu0 0
  %186 = vmatpush1.bf16.msra.mxu0 %v161
  %187 = vmatprep.subr.bf16.mxu0 0
  %188 = vmatpush1.bf16.msra.mxu0 %v160
  %189 = vmatprep.subr.bf16.mxu0 0
  %190 = vmatpush1.bf16.msra.mxu0 %v159
  %191 = vmatprep.subr.bf16.mxu0 0
  %192 = vmatpush2.bf16.msra.mxu0 0
  %193 = vmatprep.subr.bf16.mxu0 0
  %194 = vmatpush2.bf16.msra.mxu0 0
  %195 = vmatprep.subr.bf16.mxu0 0
  %196 = vmatpush2.bf16.msra.mxu0 0
  %197 = vmatprep.subr.bf16.mxu0 0
  %198 = vmatpush2.bf16.msra.mxu0 0
  %199 = vmatprep.subr.bf16.mxu0 0
  %200 = vmatpush2.bf16.msra.mxu0 0
  %201 = vmatprep.subr.bf16.mxu0 0
  %202 = vmatpush2.bf16.msra.mxu0 0
  %203 = vmatprep.subr.bf16.mxu0 0
  %204 = vmatpush2.bf16.msra.mxu0 0
  %205 = vmatprep.subr.bf16.mxu0 0
  %206 = vmatpush2.bf16.msra.mxu0 0
  %207 = vmatprep.mubr.bf16.mxu0 0
  %208 = vmatmul.mubr.bf16.gmra.mxu0 %v103
  %v209 = vpop.f32.mrf.mxu0
  %v210 = vadd.f32 %v125, %v209
  %v211 = vpop.f32.mrf.mxu0
  %v212 = vpop.f32.mrf.mxu0
  %v213 = vadd.f32 %v125, %v212
  %v214 = vpop.f32.mrf.mxu0
  %215 = vdwg.mxu0
  %v216 = vmax.f32 %v210, 0.0
  %v217 = vmax.f32 %v213, 0.0
  %v218 = vpack.c.bf16 %v217, %v216
  %v219 = vld [vmem:[%s5] sm:$0xf]
  %v220 = vld [vmem:[%s5 + $0x4] sm:$0xf]
  %v221 = vld [vmem:[%s6] sm:$0xf]
  %v222 = vld [vmem:[%s6 + $0x4] sm:$0xf]
  %v223 = vld [vmem:[%s6 + $0x8] sm:$0xf]
  %v224 = vld [vmem:[%s6 + $0xc] sm:$0xf]
  %v225 = vld [vmem:[%s6 + $0x10] sm:$0xf]
  %v226 = vld [vmem:[%s6 + $0x14] sm:$0xf]
  %v227 = vld [vmem:[%s6 + $0x18] sm:$0xf]
  %v228 = vld [vmem:[%s6 + $0x1c] sm:$0xf]
  %v229 = vld [vmem:[%s6 + $0x20] sm:$0xf]
  %v230 = vld [vmem:[%s6 + $0x24] sm:$0xf]
  %v231 = vld [vmem:[%s6 + $0x28] sm:$0xf]
  %v232 = vld [vmem:[%s6 + $0x2c] sm:$0xf]
  %v233 = vld [vmem:[%s6 + $0x30] sm:$0xf]
  %v234 = vld [vmem:[%s6 + $0x34] sm:$0xf]
  %v235 = vld [vmem:[%s6 + $0x38] sm:$0xf]
  %v236 = vld [vmem:[%s6 + $0x3c] sm:$0xf]
  %v253 = vunpack.c.l.b16 %v221
  %v254 = vunpack.c.l.b16 %v222
  %v255 = vunpack.c.l.b16 %v223
  %v256 = vunpack.c.l.b16 %v224
  %v257 = vunpack.c.l.b16 %v225
  %v258 = vunpack.c.l.b16 %v226
  %v259 = vunpack.c.l.b16 %v227
  %v260 = vunpack.c.l.b16 %v228
  %v261 = vunpack.c.l.b16 %v229
  %v262 = vunpack.c.l.b16 %v230
  %v263 = vunpack.c.l.b16 %v231
  %v264 = vunpack.c.l.b16 %v232
  %v265 = vunpack.c.l.b16 %v233
  %v266 = vunpack.c.l.b16 %v234
  %v267 = vunpack.c.l.b16 %v235
  %v268 = vunpack.c.l.b16 %v236
  %v269 = vpack.c.b16 %v254, %v253
  %v270 = vpack.c.b16 %v256, %v255
  %v271 = vpack.c.b16 %v258, %v257
  %v272 = vpack.c.b16 %v260, %v259
  %v273 = vpack.c.b16 %v262, %v261
  %v274 = vpack.c.b16 %v264, %v263
  %v275 = vpack.c.b16 %v266, %v265
  %v276 = vpack.c.b16 %v268, %v267
  %285 = vmatprep.subr.bf16.mxu0 0
  %286 = vmatpush1.bf16.msra.mxu0 %v276
  %287 = vmatprep.subr.bf16.mxu0 0
  %288 = vmatpush1.bf16.msra.mxu0 %v275
  %289 = vmatprep.subr.bf16.mxu0 0
  %290 = vmatpush1.bf16.msra.mxu0 %v274
  %291 = vmatprep.subr.bf16.mxu0 0
  %292 = vmatpush1.bf16.msra.mxu0 %v273
  %293 = vmatprep.subr.bf16.mxu0 0
  %294 = vmatpush1.bf16.msra.mxu0 %v272
  %295 = vmatprep.subr.bf16.mxu0 0
  %296 = vmatpush1.bf16.msra.mxu0 %v271
  %297 = vmatprep.subr.bf16.mxu0 0
  %298 = vmatpush1.bf16.msra.mxu0 %v270
  %299 = vmatprep.subr.bf16.mxu0 0
  %300 = vmatpush1.bf16.msra.mxu0 %v269
  %301 = vmatprep.subr.bf16.mxu0 0
  %302 = vmatpush2.bf16.msra.mxu0 0
  %303 = vmatprep.subr.bf16.mxu0 0
  %304 = vmatpush2.bf16.msra.mxu0 0
  %305 = vmatprep.subr.bf16.mxu0 0
  %306 = vmatpush2.bf16.msra.mxu0 0
  %307 = vmatprep.subr.bf16.mxu0 0
  %308 = vmatpush2.bf16.msra.mxu0 0
  %309 = vmatprep.subr.bf16.mxu0 0
  %310 = vmatpush2.bf16.msra.mxu0 0
  %311 = vmatprep.subr.bf16.mxu0 0
  %312 = vmatpush2.bf16.msra.mxu0 0
  %313 = vmatprep.subr.bf16.mxu0 0
  %314 = vmatpush2.bf16.msra.mxu0 0
  %315 = vmatprep.subr.bf16.mxu0 0
  %316 = vmatpush2.bf16.msra.mxu0 0
  %317 = vmatprep.mubr.bf16.mxu0 0
  %318 = vmatmul.mubr.bf16.gmra.mxu0 %v103
  %v319 = vpop.f32.mrf.mxu0
  %v320 = vadd.f32 0.0, %v319
  %v321 = vpop.f32.mrf.mxu0
  %v322 = vpop.f32.mrf.mxu0
  %v323 = vadd.f32 0.0, %v322
  %v324 = vpop.f32.mrf.mxu0
  %325 = vdwg.mxu0
  %v328 = vunpack.c.l.b16 %v219
  %v329 = vunpack.c.l.b16 %v220
  %v330 = vpack.c.b16 %v329, %v328
  %vm332 = vcmask 130048
  %v334 = vsel %vm332, %v218, 0
  %336 = vmatprep.subr.bf16.mxu0 0
  %337 = vmatpush1.bf16.msra.mxu0 0
  %338 = vmatprep.subr.bf16.mxu0 0
  %339 = vmatpush1.bf16.msra.mxu0 0
  %340 = vmatprep.subr.bf16.mxu0 0
  %341 = vmatpush1.bf16.msra.mxu0 0
  %342 = vmatprep.subr.bf16.mxu0 0
  %343 = vmatpush1.bf16.msra.mxu0 0
  %344 = vmatprep.subr.bf16.mxu0 0
  %345 = vmatpush1.bf16.msra.mxu0 0
  %346 = vmatprep.subr.bf16.mxu0 0
  %347 = vmatpush1.bf16.msra.mxu0 0
  %348 = vmatprep.subr.bf16.mxu0 0
  %349 = vmatpush1.bf16.msra.mxu0 0
  %350 = vmatprep.subr.bf16.mxu0 0
  %351 = vmatpush1.bf16.msra.mxu0 %v330
  %352 = vmatprep.subr.bf16.mxu0 0
  %353 = vmatpush2.bf16.msra.mxu0 0
  %354 = vmatprep.subr.bf16.mxu0 0
  %355 = vmatpush2.bf16.msra.mxu0 0
  %356 = vmatprep.subr.bf16.mxu0 0
  %357 = vmatpush2.bf16.msra.mxu0 0
  %358 = vmatprep.subr.bf16.mxu0 0
  %359 = vmatpush2.bf16.msra.mxu0 0
  %360 = vmatprep.subr.bf16.mxu0 0
  %361 = vmatpush2.bf16.msra.mxu0 0
  %362 = vmatprep.subr.bf16.mxu0 0
  %363 = vmatpush2.bf16.msra.mxu0 0
  %364 = vmatprep.subr.bf16.mxu0 0
  %365 = vmatpush2.bf16.msra.mxu0 0
  %366 = vmatprep.subr.bf16.mxu0 0
  %367 = vmatpush2.bf16.msra.mxu0 0
  %368 = vmatprep.mubr.bf16.mxu0 0
  %369 = vmatmul.mubr.bf16.gmra.mxu0 %v334
  %v370 = vpop.f32.mrf.mxu0
  %v371 = vadd.f32 %v320, %v370
  %v372 = vpop.f32.mrf.mxu0
  %v373 = vpop.f32.mrf.mxu0
  %v374 = vadd.f32 %v323, %v373
  %v375 = vpop.f32.mrf.mxu0
  %376 = vdwg.mxu0
  %v377 = vld [vmem:[%s7] sm:$0x1]
  %v379 = vlaneseq
  %v380 = vshrl.u32 %v379, 7
  %v381 = vsub.s32 0, %v380
  %v382 = vrot.slane %v377, %v381
  %v384 = vadd.f32 %v371, %v382
  %v385 = vadd.f32 %v374, %v382
  %v386 = vpack.c.bf16 %v385, %v384
  %v388 = vunpack.c.l.b16 %v386
  %v389 = vunpack.c.h.b16 %v386
  %v390 = vpack.c.b16 %v388, %v388
  %v391 = vpack.c.b16 %v389, %v389
  %vm394 = vcmask 60416
  %395 = vst.msk [vmem:[%s8] sm:$0xf] %vm394, %v390
  %396 = vst.msk [vmem:[%s8 + $0x4] sm:$0xf] %vm394, %v391
  // Predicated region
  $region34: #{tpu_custom_call.1} parent=0 // pred_check
    _
  $region35: #{tpu_custom_call.1} parent=0 // pred_check_branch
    %398 = sbr.rel (0) target = $region37
  $region36: #{tpu_custom_call.1} parent=0 // pred_region
    _
  $region37: #{tpu_custom_call.1} parent=0 // pred_fallthru
    _
  // Predicated region
  $region38: #{tpu_custom_call.1} parent=0 // pred_check
    _
  $region39: #{tpu_custom_call.1} parent=0 // pred_check_branch
    %400 = sbr.rel (0) target = $region41
  $region40: #{tpu_custom_call.1} parent=0 // pred_region
    _
  $region41: #{tpu_custom_call.1} parent=0 // pred_fallthru
    _

</llo_original>
